<compile_context>
chip_gen: v7x
topology: tpu7x:2x2x1
jax: 0.10.0
libtpu: 0.0.40
codegen_flags: <defaults>
</compile_context>

<pallas_src>
import functools

import jax
import jax.numpy as jnp
from jax import lax
from jax.experimental import pallas as pl
from jax.experimental.pallas import tpu as pltpu


def _round_up(x, m):
    return ((x + m - 1) // m) * m


# ----------------------------------------------------------------------------
# Kernel
# ----------------------------------------------------------------------------
def _mlp_kernel(n_hidden, n_chunks, chunk, activation,
                x_ref, w_ref, b_ref, out_ref):
    """Transposed-layout MLP: batch sits on the 128-lane axis.

    x_ref  : (feat_pad, tile_b)              padded input, features on sublanes
    w_ref  : (n_hidden+1, feat_pad, feat_pad) packed zero-padded weights
             (hidden layers in PyTorch (out, in) layout; the output layer's
              (1, neurons) weight is stored as a (neurons, 1) column in slot
              n_hidden, column 0)
    b_ref  : (n_hidden+1, feat_pad, 1)        packed zero-padded bias columns
    out_ref: (1, tile_b)                      lane-dense output row
    """
    # Hoist the tiny parameter loads out of the chunk loop (stay in vregs).
    ws = [w_ref[l] for l in range(n_hidden)]              # (feat_pad, feat_pad)
    bs = [b_ref[l] for l in range(n_hidden)]              # (feat_pad, 1)
    w_last_col = w_ref[n_hidden][:, 0:1]                  # (feat_pad, 1)
    b_last = b_ref[n_hidden][0:1, 0:1]                    # (1, 1)

    def body(c, carry):
        start = pl.multiple_of(c * chunk, 128)
        h = x_ref[:, pl.ds(start, chunk)]                 # (feat_pad, chunk)
        # Hidden layers: MXU matmul (batch fills output lanes) + bias + act.
        for l in range(n_hidden):
            h = jnp.dot(ws[l], h, preferred_element_type=jnp.float32) + bs[l]
            h = activation(h)
        # Final Linear(neurons, 1): VPU multiply + sublane sum -> (1, chunk).
        out = jnp.sum(w_last_col * h, axis=0, keepdims=True) + b_last
        out_ref[0:1, pl.ds(start, chunk)] = out.astype(out_ref.dtype)
        return carry

    lax.fori_loop(0, n_chunks, body, 0, unroll=True)


# ----------------------------------------------------------------------------
# Wrapper
# ----------------------------------------------------------------------------
def surrogate_nn_forward(x, weights, biases, *, activation=jnp.tanh,
                         tile_b=4096, chunk=256):
    """x: (B, dim_reduced) f32; weights[i]: (out_i, in_i); biases[i]: (out_i,).

    Returns (B, 1), matching the PyTorch module's forward.
    """
    assert len(weights) == len(biases) and len(weights) >= 2
    n_hidden = len(weights) - 1
    B, dim_reduced = x.shape
    neurons = weights[0].shape[0]
    # TODO(synk): the fast final-layer path assumes out_features == 1 (as in
    # the module spec); generalize to a matmul if a wider head is ever needed.
    assert weights[-1].shape == (1, neurons)

    feat_pad = _round_up(max(dim_reduced, neurons), 8)

    # ---- batch tiling: big tiles, but keep >=2 tiles when B allows (v7x) ----
    tile_b = max(128, _round_up(tile_b, 128))
    Bp128 = _round_up(B, 128)
    tile_b = min(tile_b, Bp128)
    if tile_b == Bp128 and Bp128 >= 256:
        tile_b = _round_up(Bp128 // 2, 128)
    grid_b = -(-Bp128 // tile_b)            # cdiv
    Bp = grid_b * tile_b

    # Lane-chunk: multiple of 128 that divides tile_b.
    chunk = max(128, (min(chunk, tile_b) // 128) * 128)
    while tile_b % chunk:
        chunk -= 128
    n_chunks = tile_b // chunk

    # ---- layout plumbing: one pad of x.T (skipped if not needed) ----
    # TODO(synk): ideally the upstream op emits x already transposed/padded.
    xT = x.T
    pad_f = feat_pad - dim_reduced
    pad_b = Bp - B
    if pad_f or pad_b:
        xT = jnp.pad(xT, ((0, pad_f), (0, pad_b)))

    # ---- pack all parameters into two zero-padded stacked arrays ----
    L = n_hidden + 1
    W_packed = jnp.zeros((L, feat_pad, feat_pad), jnp.float32)
    b_packed = jnp.zeros((L, feat_pad, 1), jnp.float32)
    for i, (w, b) in enumerate(zip(weights, biases)):
        w = w.astype(jnp.float32)
        if i < n_hidden:
            W_packed = W_packed.at[i, : w.shape[0], : w.shape[1]].set(w)
        else:
            # output-layer (1, neurons) weight stored as a (neurons, 1) column
            W_packed = W_packed.at[i, : w.shape[1], 0].set(w[0, :])
        b_packed = b_packed.at[i, : w.shape[0], 0].set(b.astype(jnp.float32))

    in_specs = [
        pl.BlockSpec((feat_pad, tile_b), lambda i: (0, i)),
        pl.BlockSpec((L, feat_pad, feat_pad), lambda i: (0, 0, 0)),
        pl.BlockSpec((L, feat_pad, 1), lambda i: (0, 0, 0)),
    ]
    out_spec = pl.BlockSpec((1, tile_b), lambda i: (0, i))

    # Advisory cost estimate: tiny FLOPs, bytes dominated by the x stream.
    flops = int(sum(2 * w.shape[0] * w.shape[1] for w in weights)) * Bp
    transcendentals = int(sum(w.shape[0] for w in weights[:-1])) * Bp
    bytes_accessed = int(
        xT.size * xT.dtype.itemsize
        + Bp * x.dtype.itemsize
        + W_packed.size * 4
        + b_packed.size * 4
    )

    kernel = functools.partial(_mlp_kernel, n_hidden, n_chunks, chunk, activation)

    out_t = pl.pallas_call(
        kernel,
        out_shape=jax.ShapeDtypeStruct((1, Bp), x.dtype),
        grid=(grid_b,),
        in_specs=in_specs,
        out_specs=out_spec,
        compiler_params=pltpu.CompilerParams(
            dimension_semantics=("parallel",),   # shard batch tiles across TCs
        ),
        cost_estimate=pl.CostEstimate(
            flops=flops,
            transcendentals=transcendentals,
            bytes_accessed=bytes_accessed,
        ),
    )(xT, W_packed, b_packed)

    # Back to the module's (B, 1) output layout.
    return out_t[:, :B].T


# ----------------------------------------------------------------------------
# Pure-JAX reference (natural (B, features) layout) for correctness checking.
# ----------------------------------------------------------------------------
def surrogate_nn_ref(x, weights, biases, activation=jnp.tanh):
    h = x
    n_layers = len(weights)
    for i, (w, b) in enumerate(zip(weights, biases)):
        h = h @ w.T + b[None, :]
        if i < n_layers - 1:
            h = activation(h)
    return h


# ----------------------------------------------------------------------------
# Deterministic parameter construction (torch.nn.Linear layout: W (out, in),
# b (out,), uniform(-1/sqrt(fan_in), 1/sqrt(fan_in))).
# ----------------------------------------------------------------------------
def make_params(key, layers_surrogate, neurons_surrogate, dim_reduced):
    dims = [dim_reduced] + [neurons_surrogate] * layers_surrogate + [1]
    weights, biases = [], []
    for i in range(len(dims) - 1):
        key, kw, kb = jax.random.split(key, 3)
        fan_in = dims[i]
        bound = 1.0 / float(jnp.sqrt(fan_in))
        w = jax.random.uniform(kw, (dims[i + 1], dims[i]),
                               minval=-bound, maxval=bound, dtype=jnp.float32)
        b = jax.random.uniform(kb, (dims[i + 1],),
                               minval=-bound, maxval=bound, dtype=jnp.float32)
        weights.append(w)
        biases.append(b)
    return weights, biases


if __name__ == "__main__":
    # Small, module-consistent shapes.  `activation` = tanh (configurable).
    layers_surrogate = 3       # -> 3 hidden Linear layers + output Linear
    neurons_surrogate = 32
    dim_reduced = 8
    batch = 200                # not a multiple of 128: exercises padding + 2-tile grid

    key = jax.random.PRNGKey(0)
    key, kx = jax.random.split(key)
    x = jax.random.normal(kx, (batch, dim_reduced), dtype=jnp.float32)
    weights, biases = make_params(key, layers_surrogate, neurons_surrogate, dim_reduced)

    out = surrogate_nn_forward(x, weights, biases, activation=jnp.tanh)
    out = jax.block_until_ready(out)

    ref = surrogate_nn_ref(x, weights, biases, activation=jnp.tanh)
    assert out.shape == (batch, 1), out.shape
    assert jnp.allclose(out, ref, atol=1e-5, rtol=1e-5), (out, ref)

    print("KERNEL_OK")
</pallas_src>

<mosaic_0001>
module attributes {stable_mosaic.version = 11 : i64} {
  func.func @_mlp_kernel(%arg0: i32, %arg1: memref<32x128xf32, #tpu.memory_space<vmem>>, %arg2: memref<4x32x32xf32, #tpu.memory_space<vmem>>, %arg3: memref<4x32x1xf32, #tpu.memory_space<vmem>>, %arg4: memref<1x128xf32, #tpu.memory_space<vmem>>) attributes {dimension_semantics = [#tpu.dimension_semantics<parallel>], iteration_bounds = array<i64: 2>, scalar_prefetch = 0 : i64, scratch_operands = 0 : i64, tpu.core_type = #tpu.core_type<tc>, window_params = [{transform_indices = @transform_0, window_bounds = array<i64: 32, 128>}, {pipeline_mode = #tpu.pipeline_mode<synchronous>, transform_indices = @transform_1, window_bounds = array<i64: 4, 32, 32>}, {pipeline_mode = #tpu.pipeline_mode<synchronous>, transform_indices = @transform_2, window_bounds = array<i64: 4, 32, 1>}, {transform_indices = @transform_3, window_bounds = array<i64: 1, 128>}]} {
    %c0 = arith.constant 0 : index
    %c0_0 = arith.constant 0 : index
    %c0_1 = arith.constant 0 : index
    %0 = vector.load %arg2[%c0, %c0_0, %c0_1] : memref<4x32x32xf32, #tpu.memory_space<vmem>>, vector<1x32x32xf32>
    %1 = vector.shape_cast %0 : vector<1x32x32xf32> to vector<32x32xf32>
    %c1 = arith.constant 1 : index
    %c0_2 = arith.constant 0 : index
    %c0_3 = arith.constant 0 : index
    %2 = vector.load %arg2[%c1, %c0_2, %c0_3] : memref<4x32x32xf32, #tpu.memory_space<vmem>>, vector<1x32x32xf32>
    %3 = vector.shape_cast %2 : vector<1x32x32xf32> to vector<32x32xf32>
    %c2 = arith.constant 2 : index
    %c0_4 = arith.constant 0 : index
    %c0_5 = arith.constant 0 : index
    %4 = vector.load %arg2[%c2, %c0_4, %c0_5] : memref<4x32x32xf32, #tpu.memory_space<vmem>>, vector<1x32x32xf32>
    %5 = vector.shape_cast %4 : vector<1x32x32xf32> to vector<32x32xf32>
    %c0_6 = arith.constant 0 : index
    %c0_7 = arith.constant 0 : index
    %c0_8 = arith.constant 0 : index
    %6 = vector.load %arg3[%c0_6, %c0_7, %c0_8] : memref<4x32x1xf32, #tpu.memory_space<vmem>>, vector<1x32x1xf32>
    %7 = vector.shape_cast %6 : vector<1x32x1xf32> to vector<32x1xf32>
    %c1_9 = arith.constant 1 : index
    %c0_10 = arith.constant 0 : index
    %c0_11 = arith.constant 0 : index
    %8 = vector.load %arg3[%c1_9, %c0_10, %c0_11] : memref<4x32x1xf32, #tpu.memory_space<vmem>>, vector<1x32x1xf32>
    %9 = vector.shape_cast %8 : vector<1x32x1xf32> to vector<32x1xf32>
    %c2_12 = arith.constant 2 : index
    %c0_13 = arith.constant 0 : index
    %c0_14 = arith.constant 0 : index
    %10 = vector.load %arg3[%c2_12, %c0_13, %c0_14] : memref<4x32x1xf32, #tpu.memory_space<vmem>>, vector<1x32x1xf32>
    %11 = vector.shape_cast %10 : vector<1x32x1xf32> to vector<32x1xf32>
    %c3 = arith.constant 3 : index
    %c0_15 = arith.constant 0 : index
    %c0_16 = arith.constant 0 : index
    %12 = vector.load %arg2[%c3, %c0_15, %c0_16] : memref<4x32x32xf32, #tpu.memory_space<vmem>>, vector<1x32x32xf32>
    %13 = vector.shape_cast %12 : vector<1x32x32xf32> to vector<32x32xf32>
    %14 = vector.extract_strided_slice %13 {offsets = [0, 0], sizes = [32, 1], strides = [1, 1]} : vector<32x32xf32> to vector<32x1xf32>
    %c3_17 = arith.constant 3 : index
    %c0_18 = arith.constant 0 : index
    %c0_19 = arith.constant 0 : index
    %15 = vector.load %arg3[%c3_17, %c0_18, %c0_19] : memref<4x32x1xf32, #tpu.memory_space<vmem>>, vector<1x32x1xf32>
    %16 = vector.shape_cast %15 : vector<1x32x1xf32> to vector<32x1xf32>
    %17 = vector.extract_strided_slice %16 {offsets = [0, 0], sizes = [1, 1], strides = [1, 1]} : vector<32x1xf32> to vector<1x1xf32>
    %c0_i32 = arith.constant 0 : i32
    %c128_i32 = arith.constant 128 : i32
    %18 = arith.muli %c0_i32, %c128_i32 : i32
    %19 = tpu.assume_multiple %18, 128 : i32
    %c0_20 = arith.constant 0 : index
    %20 = arith.index_cast %19 : i32 to index
    %21 = vector.load %arg1[%c0_20, %20] : memref<32x128xf32, #tpu.memory_space<vmem>>, vector<32x128xf32>
    %cst = arith.constant dense<0.000000e+00> : vector<32x128xf32>
    %22 = tpu.matmul %1, %21, %cst {dimension_numbers = #tpu.dot_dimension_numbers<[1], [0], [0], [1], [0, 0, 1, 1], [], []>} : vector<32x32xf32>, vector<32x128xf32>, vector<32x128xf32> -> vector<32x128xf32>
    %23 = vector.broadcast %7 : vector<32x1xf32> to vector<32x128xf32>
    %24 = arith.addf %22, %23 : vector<32x128xf32>
    %25 = math.tanh %24 : vector<32x128xf32>
    %cst_21 = arith.constant dense<0.000000e+00> : vector<32x128xf32>
    %26 = tpu.matmul %3, %25, %cst_21 {dimension_numbers = #tpu.dot_dimension_numbers<[1], [0], [0], [1], [0, 0, 1, 1], [], []>} : vector<32x32xf32>, vector<32x128xf32>, vector<32x128xf32> -> vector<32x128xf32>
    %27 = vector.broadcast %9 : vector<32x1xf32> to vector<32x128xf32>
    %28 = arith.addf %26, %27 : vector<32x128xf32>
    %29 = math.tanh %28 : vector<32x128xf32>
    %cst_22 = arith.constant dense<0.000000e+00> : vector<32x128xf32>
    %30 = tpu.matmul %5, %29, %cst_22 {dimension_numbers = #tpu.dot_dimension_numbers<[1], [0], [0], [1], [0, 0, 1, 1], [], []>} : vector<32x32xf32>, vector<32x128xf32>, vector<32x128xf32> -> vector<32x128xf32>
    %31 = vector.broadcast %11 : vector<32x1xf32> to vector<32x128xf32>
    %32 = arith.addf %30, %31 : vector<32x128xf32>
    %33 = math.tanh %32 : vector<32x128xf32>
    %34 = vector.broadcast %14 : vector<32x1xf32> to vector<32x128xf32>
    %35 = arith.mulf %34, %33 : vector<32x128xf32>
    %cst_23 = arith.constant dense<0.000000e+00> : vector<128xf32>
    %36 = vector.multi_reduction <add>, %35, %cst_23 [0] : vector<32x128xf32> to vector<128xf32>
    %37 = vector.shape_cast %36 : vector<128xf32> to vector<1x128xf32>
    %38 = vector.broadcast %17 : vector<1x1xf32> to vector<1x128xf32>
    %39 = arith.addf %37, %38 : vector<1x128xf32>
    %c0_24 = arith.constant 0 : index
    %40 = arith.index_cast %19 : i32 to index
    %41 = vector.load %arg4[%c0_24, %40] : memref<1x128xf32, #tpu.memory_space<vmem>>, vector<1x128xf32>
    tpu.vector_store %arg4[%c0_24, %40], %39 {strides = array<i32>} : memref<1x128xf32, #tpu.memory_space<vmem>>, vector<1x128xf32>,
    %c1_i32 = arith.constant 1 : i32
    return
  }
  func.func @transform_0(%arg0: i32) -> (i32, i32) {
    %c0_i32 = arith.constant 0 : i32
    %c0_i32_0 = arith.constant 0 : i32
    return %c0_i32, %arg0 : i32, i32
  }
  func.func @transform_1(%arg0: i32) -> (i32, i32, i32) {
    %c0_i32 = arith.constant 0 : i32
    %c0_i32_0 = arith.constant 0 : i32
    %c0_i32_1 = arith.constant 0 : i32
    %c0_i32_2 = arith.constant 0 : i32
    return %c0_i32, %c0_i32_0, %c0_i32_1 : i32, i32, i32
  }
  func.func @transform_2(%arg0: i32) -> (i32, i32, i32) {
    %c0_i32 = arith.constant 0 : i32
    %c0_i32_0 = arith.constant 0 : i32
    %c0_i32_1 = arith.constant 0 : i32
    %c0_i32_2 = arith.constant 0 : i32
    return %c0_i32, %c0_i32_0, %c0_i32_1 : i32, i32, i32
  }
  func.func @transform_3(%arg0: i32) -> (i32, i32) {
    %c0_i32 = arith.constant 0 : i32
    %c0_i32_0 = arith.constant 0 : i32
    return %c0_i32, %arg0 : i32, i32
  }
}

</mosaic_0001>

<llo_original>
// kernel: tpu_custom_call.1
$region0: #{tpu_custom_call.1}
  #allocation0 [shape = 'u32[]', space=smem, size = 0x4, offset = 0x4, fixed_abs, tag = 'smem constant byte address 0x4 - core index']
  #allocation1 [shape = 'u32[144,128]{1,0:T(1,128)}', space=vmem, size = 0x12000, scoped, tag = 'internal scratch']
  %s0 = inlined_call_operand.hbm [shape: f32[32,256], index: 0, kind: input, shape index: {}]
  %s1 = inlined_call_operand.vmem [shape: f32[4,32,32], index: 1, kind: input, shape index: {}]
  %s2 = inlined_call_operand.vmem [shape: f32[4,32,1], index: 2, kind: input, shape index: {}]
  %s3 = inlined_call_operand.hbm [shape: f32[1,256], index: 3, kind: output, shape index: {}]
  %s4 = sld [smem:[#allocation0]]
  $region49: #{tpu_custom_call.1} parent=0
    _
  %s6 = ssub.s32 1, %s4
  %s7 = scalar_select 0, %s6, %s4
  $region1: #{tpu_custom_call.1} parent=0
    #allocation2 [shape = 'u8[32768]{0}', space=vmem, size = 0x8000, scoped, tag = 'input window, operand 0']
    #allocation3 [shape = 's32[2]{0}', space=sflag, size = 0x8, scoped, tag = 'scoped memory for tpu_custom_call.1']
    #allocation4 [shape = 's32[2]{0}', space=sflag, size = 0x8, scoped, tag = 'scoped memory for tpu_custom_call.1']
    #allocation5 [shape = 'u8[1024]{0}', space=vmem, size = 0x400, scoped, tag = 'output window, operand 0']
    %8 = vsyncpa [#allocation3], 0
    %s9 = scalar_lea.sflag [#allocation3], 1
    %10 = vsyncpa %s9, 0
    %11 = vsyncpa [#allocation4], 0
    %s12 = scalar_lea.sflag [#allocation4], 1
    %13 = vsyncpa %s12, 0
    loop: start=0, step=1, limit=4
    $region2: #{tpu_custom_call.1} parent=1 // loop_pre_header
      _
    $region3: #{tpu_custom_call.1} parent=1 // loop_header
      %s15 = sphi 0, %s19
      %p16 = scmp.ge.s32.totalorder %s15, 4
      %s25 = sphi 0, %s27
      %s28 = sphi 0, %s25
      %s29 = sphi 0, %s28
      %s45 = sphi 0, %s29
      %s49 = sphi 0, %s49
      %s51 = sphi 0, %s49
      %s52 = sphi 0, %s51
      %s66 = sphi 0, %s52
      %s70 = sphi 0, %s70
      %s72 = sphi 0, %s70
      %s73 = sphi 0, %s72
      %s87 = sphi 0, %s73
      %s93 = sphi 0, %s95
      %s96 = sphi 0, %s93
      %s97 = sphi 0, %s96
      %s113 = sphi 0, %s97
    $region4: #{tpu_custom_call.1} parent=1 // loop_header_branch
      %18 = sbr.rel (%p16) target = $region8
    $region5: #{tpu_custom_call.1} parent=1 // loop_body
      %s20 = ssub.s32 %s15, 1
      %s21 = ssub.s32 %s15, 2
      %s22 = sadd.s32 %s15, 1
      %s23 = ssub.s32 %s15, %s22
      %p24 = scmp.eq.s32.totalorder %s23, 0
      %s26 = sadd.s32 %s25, 1
      %s27 = scalar_select %p24, %s25, %s26
      %p30 = pneg %p24
      %p31 = scmp.eq.s32.totalorder %s15, 1
      %p32 = por %p30, %p31
      %p33 = scmp.ne.s32.totalorder %s25, %s28
      %p34 = scmp.eq.s32.totalorder %s15, 0
      %p35 = por %p33, %p34
      %p36 = scmp.ne.s32.totalorder %s25, %s28
      %p37 = scmp.eq.s32.totalorder %s20, 1
      %p38 = por %p36, %p37
      %p39 = scmp.ne.s32.totalorder %s28, %s29
      %p40 = scmp.eq.s32.totalorder %s20, 0
      %p41 = por %p39, %p40
      %p42 = scmp.ne.s32.totalorder %s28, %s29
      %p43 = scmp.eq.s32.totalorder %s21, 1
      %p44 = por %p42, %p43
      %p46 = scmp.ne.s32.totalorder %s29, %s45
      %p47 = scmp.eq.s32.totalorder %s21, 0
      %p48 = por %p46, %p47
      %s50 = sadd.s32 %s49, 1
      %p53 = scmp.eq.s32.totalorder %s15, 1
      %p54 = scmp.ne.s32.totalorder %s49, %s51
      %p55 = scmp.eq.s32.totalorder %s15, 0
      %p56 = por %p54, %p55
      %p57 = scmp.ne.s32.totalorder %s49, %s51
      %p58 = scmp.eq.s32.totalorder %s20, 1
      %p59 = por %p57, %p58
      %p60 = scmp.ne.s32.totalorder %s51, %s52
      %p61 = scmp.eq.s32.totalorder %s20, 0
      %p62 = por %p60, %p61
      %p63 = scmp.ne.s32.totalorder %s51, %s52
      %p64 = scmp.eq.s32.totalorder %s21, 1
      %p65 = por %p63, %p64
      %p67 = scmp.ne.s32.totalorder %s52, %s66
      %p68 = scmp.eq.s32.totalorder %s21, 0
      %p69 = por %p67, %p68
      %s71 = sadd.s32 %s70, 1
      %p74 = scmp.eq.s32.totalorder %s15, 1
      %p75 = scmp.ne.s32.totalorder %s70, %s72
      %p76 = scmp.eq.s32.totalorder %s15, 0
      %p77 = por %p75, %p76
      %p78 = scmp.ne.s32.totalorder %s70, %s72
      %p79 = scmp.eq.s32.totalorder %s20, 1
      %p80 = por %p78, %p79
      %p81 = scmp.ne.s32.totalorder %s72, %s73
      %p82 = scmp.eq.s32.totalorder %s20, 0
      %p83 = por %p81, %p82
      %p84 = scmp.ne.s32.totalorder %s72, %s73
      %p85 = scmp.eq.s32.totalorder %s21, 1
      %p86 = por %p84, %p85
      %p88 = scmp.ne.s32.totalorder %s73, %s87
      %p89 = scmp.eq.s32.totalorder %s21, 0
      %p90 = por %p88, %p89
      %s91 = ssub.s32 %s15, %s22
      %p92 = scmp.eq.s32.totalorder %s91, 0
      %s94 = sadd.s32 %s93, 1
      %s95 = scalar_select %p92, %s93, %s94
      %p98 = pneg %p92
      %p99 = scmp.eq.s32.totalorder %s15, 1
      %p100 = por %p98, %p99
      %p101 = scmp.ne.s32.totalorder %s93, %s96
      %p102 = scmp.eq.s32.totalorder %s15, 0
      %p103 = por %p101, %p102
      %p104 = scmp.ne.s32.totalorder %s93, %s96
      %p105 = scmp.eq.s32.totalorder %s20, 1
      %p106 = por %p104, %p105
      %p107 = scmp.ne.s32.totalorder %s96, %s97
      %p108 = scmp.eq.s32.totalorder %s20, 0
      %p109 = por %p107, %p108
      %p110 = scmp.ne.s32.totalorder %s96, %s97
      %p111 = scmp.eq.s32.totalorder %s21, 1
      %p112 = por %p110, %p111
      %p114 = scmp.ne.s32.totalorder %s97, %s113
      %p115 = scmp.eq.s32.totalorder %s21, 0
      %p116 = por %p114, %p115
      %p117 = scmp.le.s32.totalorder 1, %s15
      %p118 = scmp.lt.s32.totalorder %s15, 3
      %p119 = pnand %p117, %p118
      %p120 = pneg %p119
      // Predicated region
      $region9: #{tpu_custom_call.1} parent=5 // pred_check
        _
      $region10: #{tpu_custom_call.1} parent=5 // pred_check_branch
        %122 = sbr.rel (%p119) target = $region12
      $region11: #{tpu_custom_call.1} parent=5 // pred_region
        %s123 = ssub.s32 %s15, 1
        // Predicated region
        $region13: #{tpu_custom_call.1} parent=11 // pred_check
          %p124 = pneg %p62
        $region14: #{tpu_custom_call.1} parent=11 // pred_check_branch
          %126 = sbr.rel (%p124) target = $region16
        $region15: #{tpu_custom_call.1} parent=11 // pred_region
          _
        $region16: #{tpu_custom_call.1} parent=11 // pred_fallthru
          _
        // Predicated region
        $region17: #{tpu_custom_call.1} parent=11 // pred_check
          %p127 = pneg %p83
        $region18: #{tpu_custom_call.1} parent=11 // pred_check_branch
          %129 = sbr.rel (%p127) target = $region20
        $region19: #{tpu_custom_call.1} parent=11 // pred_region
          _
        $region20: #{tpu_custom_call.1} parent=11 // pred_fallthru
          _
      $region12: #{tpu_custom_call.1} parent=5 // pred_fallthru
        _
      %p130 = scmp.lt.s32.totalorder %s15, 2
      // Predicated region
      $region21: #{tpu_custom_call.1} parent=5 // pred_check
        %p131 = pneg %p130
      $region22: #{tpu_custom_call.1} parent=5 // pred_check_branch
        %133 = sbr.rel (%p131) target = $region24
      $region23: #{tpu_custom_call.1} parent=5 // pred_region
        // Predicated region
        $region25: #{tpu_custom_call.1} parent=23 // pred_check
          %p134 = pneg %p35
        $region26: #{tpu_custom_call.1} parent=23 // pred_check_branch
          %136 = sbr.rel (%p134) target = $region28
        $region27: #{tpu_custom_call.1} parent=23 // pred_region
          %s137 = sand.u32 %s25, 1
          %s138 = scalar_lea.sflag [#allocation3], %s137
          %s139 = sand.u32 %s25, 1
          %s140 = smul.addr %s139, 32
          %s141 = scalar_lea.vmem [#allocation2], %s140
          %s143 = ssub.s32 512, 512
          %144 = vsyncadd %s138, %s143
          %s145 = smul.addr %s15, 128
          %s146 = scalar_lea.hbm %s0, %s145
          %s147 = sshll.u32 %s141, 4
          %s148 = int_to_ptr.vmem [resolvable:$true] %s147
          %153 = dma.hbm_to_vmem [thread:$0]  %s146, 512, %s148, %s138, 256, 128, 8
        $region28: #{tpu_custom_call.1} parent=23 // pred_fallthru
          _
      $region24: #{tpu_custom_call.1} parent=5 // pred_fallthru
        _
      %p154 = scmp.le.s32.totalorder 1, %s15
      %p155 = scmp.lt.s32.totalorder %s15, 3
      %p156 = pnand %p154, %p155
      %p157 = pneg %p156
      // Predicated region
      $region29: #{tpu_custom_call.1} parent=5 // pred_check
        _
      $region30: #{tpu_custom_call.1} parent=5 // pred_check_branch
        %159 = sbr.rel (%p156) target = $region32
      $region31: #{tpu_custom_call.1} parent=5 // pred_region
        %s160 = ssub.s32 %s15, 1
        %s161 = sand.u32 %s28, 1
        %s162 = scalar_lea.sflag [#allocation3], %s161
        %s163 = sand.u32 %s28, 1
        %s164 = smul.addr %s163, 32
        %s165 = scalar_lea.vmem [#allocation2], %s164
        // Predicated region
        $region33: #{tpu_custom_call.1} parent=31 // pred_check
          %p166 = pneg %p41
        $region34: #{tpu_custom_call.1} parent=31 // pred_check_branch
          %168 = sbr.rel (%p166) target = $region36
        $region35: #{tpu_custom_call.1} parent=31 // pred_region
          %169 = dma.done %s162, 512
        $region36: #{tpu_custom_call.1} parent=31 // pred_fallthru
          _
        %s170 = sand.u32 %s28, 1
        %s171 = scalar_lea.sflag [#allocation3], %s170
        %s172 = sand.u32 %s28, 1
        %s173 = smul.addr %s172, 32
        %s174 = scalar_lea.vmem [#allocation2], %s173
        %p175 = pneg %p41
        %p176 = pneg %p38
        %p177 = pneg %p62
        %p178 = pneg %p59
        %p179 = pneg %p83
        %p180 = pneg %p80
        %p181 = pneg %p109
        %p182 = pneg %p106
        %s183 = sand.u32 %s96, 1
        %s184 = scalar_lea.sflag [#allocation4], %s183
        %s185 = sand.u32 %s96, 1
        %s186 = scalar_lea.vmem [#allocation5], %s185
        %v187 = vld [vmem:[%s1] sm:$0xff]
        %v188 = vld [vmem:[%s1 + $0x8] sm:$0xff]
        %v189 = vld [vmem:[%s1 + $0x10] sm:$0xff]
        %v190 = vld [vmem:[%s1 + $0x18] sm:$0xff]
        %s191 = scalar_lea.vmem %s1, 32
        %v192 = vld [vmem:[%s191] sm:$0xff]
        %v193 = vld [vmem:[%s191 + $0x8] sm:$0xff]
        %v194 = vld [vmem:[%s191 + $0x10] sm:$0xff]
        %v195 = vld [vmem:[%s191 + $0x18] sm:$0xff]
        %s196 = scalar_lea.vmem %s1, 64
        %v197 = vld [vmem:[%s196] sm:$0xff]
        %v198 = vld [vmem:[%s196 + $0x8] sm:$0xff]
        %v199 = vld [vmem:[%s196 + $0x10] sm:$0xff]
        %v200 = vld [vmem:[%s196 + $0x18] sm:$0xff]
        %v201 = vld [vmem:[%s2] sm:$0xff]
        %v202 = vld [vmem:[%s2 + $0x8] sm:$0xff]
        %v203 = vld [vmem:[%s2 + $0x10] sm:$0xff]
        %v204 = vld [vmem:[%s2 + $0x18] sm:$0xff]
        %s205 = scalar_lea.vmem %s2, 32
        %v206 = vld [vmem:[%s205] sm:$0xff]
        %v207 = vld [vmem:[%s205 + $0x8] sm:$0xff]
        %v208 = vld [vmem:[%s205 + $0x10] sm:$0xff]
        %v209 = vld [vmem:[%s205 + $0x18] sm:$0xff]
        %s210 = scalar_lea.vmem %s2, 64
        %v211 = vld [vmem:[%s210] sm:$0xff]
        %v212 = vld [vmem:[%s210 + $0x8] sm:$0xff]
        %v213 = vld [vmem:[%s210 + $0x10] sm:$0xff]
        %v214 = vld [vmem:[%s210 + $0x18] sm:$0xff]
        %s215 = scalar_lea.vmem %s1, 96
        %v216 = vld [vmem:[%s215] sm:$0xff]
        %v217 = vld [vmem:[%s215 + $0x8] sm:$0xff]
        %v218 = vld [vmem:[%s215 + $0x10] sm:$0xff]
        %v219 = vld [vmem:[%s215 + $0x18] sm:$0xff]
        %s220 = scalar_lea.vmem %s2, 96
        %v221 = vld [vmem:[%s220] sm:$0xff]
        %v222 = vld [vmem:[%s165] sm:$0xff]
        %v223 = vld [vmem:[%s165 + $0x8] sm:$0xff]
        %v224 = vld [vmem:[%s165 + $0x10] sm:$0xff]
        %v225 = vld [vmem:[%s165 + $0x18] sm:$0xff]
        %227 = vset.pattern.permute.xlu0 0
        %228 = vperm.xlu0 %227, %v201
        %v229 = vpop.permute.xlu0 %228
        %232 = vset.pattern.permute.xlu0 0
        %233 = vperm.xlu0 %232, %v202
        %v234 = vpop.permute.xlu0 %233
        %237 = vset.pattern.permute.xlu0 0
        %238 = vperm.xlu0 %237, %v203
        %v239 = vpop.permute.xlu0 %238
        %242 = vset.pattern.permute.xlu0 0
        %243 = vperm.xlu0 %242, %v204
        %v244 = vpop.permute.xlu0 %243
        %vm246 = vcmask 261120
        %v248 = vsel %vm246, %v187, 0
        %v251 = vsel %vm246, %v188, 0
        %v254 = vsel %vm246, %v189, 0
        %v257 = vsel %vm246, %v190, 0
        %259 = vmatprep.subr.mxu0 0.0
        %260 = vmatpush1.msra.mxu0 %v222
        %261 = vmatprep.subr.mxu0 0.0
        %262 = vmatpush1.msra.mxu0 %v223
        %263 = vmatprep.subr.mxu0 0.0
        %264 = vmatpush1.msra.mxu0 %v224
        %265 = vmatprep.subr.mxu0 0.0
        %266 = vmatpush1.msra.mxu0 %v225
        %267 = vmatprep.subr.mxu0 0.0
        %268 = vmatpush1.msra.mxu0 0.0
        %269 = vmatprep.subr.mxu0 0.0
        %270 = vmatpush1.msra.mxu0 0.0
        %271 = vmatprep.subr.mxu0 0.0
        %272 = vmatpush1.msra.mxu0 0.0
        %273 = vmatprep.subr.mxu0 0.0
        %274 = vmatpush1.msra.mxu0 0.0
        %275 = vmatprep.subr.mxu0 0.0
        %276 = vmatpush1.msra.mxu0 0.0
        %277 = vmatprep.subr.mxu0 0.0
        %278 = vmatpush1.msra.mxu0 0.0
        %279 = vmatprep.subr.mxu0 0.0
        %280 = vmatpush1.msra.mxu0 0.0
        %281 = vmatprep.subr.mxu0 0.0
        %282 = vmatpush1.msra.mxu0 0.0
        %283 = vmatprep.subr.mxu0 0.0
        %284 = vmatpush1.msra.mxu0 0.0
        %285 = vmatprep.subr.mxu0 0.0
        %286 = vmatpush1.msra.mxu0 0.0
        %287 = vmatprep.subr.mxu0 0.0
        %288 = vmatpush1.msra.mxu0 0.0
        %289 = vmatprep.subr.mxu0 0.0
        %290 = vmatpush1.msra.mxu0 0.0
        %291 = vmatprep.subr.mxu0 0.0
        %292 = vmatpush1.msra.mxu0 0.0
        %293 = vmatprep.subr.mxu0 0.0
        %294 = vmatpush1.msra.mxu0 0.0
        %295 = vmatprep.subr.mxu0 0.0
        %296 = vmatpush1.msra.mxu0 0.0
        %297 = vmatprep.subr.mxu0 0.0
        %298 = vmatpush1.msra.mxu0 0.0
        %299 = vmatprep.subr.mxu0 0.0
        %300 = vmatpush1.msra.mxu0 0.0
        %301 = vmatprep.subr.mxu0 0.0
        %302 = vmatpush1.msra.mxu0 0.0
        %303 = vmatprep.subr.mxu0 0.0
        %304 = vmatpush1.msra.mxu0 0.0
        %305 = vmatprep.subr.mxu0 0.0
        %306 = vmatpush1.msra.mxu0 0.0
        %307 = vmatprep.subr.mxu0 0.0
        %308 = vmatpush1.msra.mxu0 0.0
        %309 = vmatprep.subr.mxu0 0.0
        %310 = vmatpush1.msra.mxu0 0.0
        %311 = vmatprep.subr.mxu0 0.0
        %312 = vmatpush1.msra.mxu0 0.0
        %313 = vmatprep.subr.mxu0 0.0
        %314 = vmatpush1.msra.mxu0 0.0
        %315 = vmatprep.subr.mxu0 0.0
        %316 = vmatpush1.msra.mxu0 0.0
        %317 = vmatprep.subr.mxu0 0.0
        %318 = vmatpush1.msra.mxu0 0.0
        %319 = vmatprep.subr.mxu0 0.0
        %320 = vmatpush1.msra.mxu0 0.0
        %321 = vmatprep.subr.mxu0 0.0
        %322 = vmatpush1.msra.mxu0 0.0
        %323 = vmatprep.mubr.f32.mxu0 0.0
        %324 = vmatmul.mubr.f32.gmra.mrb[0].mxu0 %v248
        %v325 = vpop.f32.mrb[0].mxu0
        %v326 = vadd.f32 %v229, %v325
        %v327 = vpop.f32.mrb[0].mxu0
        %328 = vmatprep.mubr.f32.mxu0 0.0
        %329 = vmatmul.mubr.f32.gmra.mrb[0].mxu0 %v251
        %v330 = vpop.f32.mrb[0].mxu0
        %v331 = vadd.f32 %v234, %v330
        %v332 = vpop.f32.mrb[0].mxu0
        %333 = vmatprep.mubr.f32.mxu0 0.0
        %334 = vmatmul.mubr.f32.gmra.mrb[0].mxu0 %v254
        %v335 = vpop.f32.mrb[0].mxu0
        %v336 = vadd.f32 %v239, %v335
        %v337 = vpop.f32.mrb[0].mxu0
        %338 = vmatprep.mubr.f32.mxu0 0.0
        %339 = vmatmul.mubr.f32.gmra.mrb[0].mxu0 %v257
        %v340 = vpop.f32.mrb[0].mxu0
        %v341 = vadd.f32 %v244, %v340
        %v342 = vpop.f32.mrb[0].mxu0
        %343 = vdwg.mxu0
        %v344 = vtanh.pop %v326
        %v345 = vtanh.pop %v331
        %v346 = vtanh.pop %v336
        %v347 = vtanh.pop %v341
        %349 = vset.pattern.permute.xlu0 0
        %350 = vperm.xlu0 %349, %v206
        %v351 = vpop.permute.xlu0 %350
        %354 = vset.pattern.permute.xlu0 0
        %355 = vperm.xlu0 %354, %v207
        %v356 = vpop.permute.xlu0 %355
        %359 = vset.pattern.permute.xlu0 0
        %360 = vperm.xlu0 %359, %v208
        %v361 = vpop.permute.xlu0 %360
        %364 = vset.pattern.permute.xlu0 0
        %365 = vperm.xlu0 %364, %v209
        %v366 = vpop.permute.xlu0 %365
        %v369 = vsel %vm246, %v192, 0
        %v372 = vsel %vm246, %v193, 0
        %v375 = vsel %vm246, %v194, 0
        %v378 = vsel %vm246, %v195, 0
        %380 = vmatprep.subr.mxu0 0.0
        %381 = vmatpush1.msra.mxu0 %v344
        %382 = vmatprep.subr.mxu0 0.0
        %383 = vmatpush1.msra.mxu0 %v345
        %384 = vmatprep.subr.mxu0 0.0
        %385 = vmatpush1.msra.mxu0 %v346
        %386 = vmatprep.subr.mxu0 0.0
        %387 = vmatpush1.msra.mxu0 %v347
        %388 = vmatprep.subr.mxu0 0.0
        %389 = vmatpush1.msra.mxu0 0.0
        %390 = vmatprep.subr.mxu0 0.0
        %391 = vmatpush1.msra.mxu0 0.0
        %392 = vmatprep.subr.mxu0 0.0
        %393 = vmatpush1.msra.mxu0 0.0
        %394 = vmatprep.subr.mxu0 0.0
        %395 = vmatpush1.msra.mxu0 0.0
        %396 = vmatprep.subr.mxu0 0.0
        %397 = vmatpush1.msra.mxu0 0.0
        %398 = vmatprep.subr.mxu0 0.0
        %399 = vmatpush1.msra.mxu0 0.0
        %400 = vmatprep.subr.mxu0 0.0
        %401 = vmatpush1.msra.mxu0 0.0
        %402 = vmatprep.subr.mxu0 0.0
        %403 = vmatpush1.msra.mxu0 0.0
        %404 = vmatprep.subr.mxu0 0.0
        %405 = vmatpush1.msra.mxu0 0.0
        %406 = vmatprep.subr.mxu0 0.0
        %407 = vmatpush1.msra.mxu0 0.0
        %408 = vmatprep.subr.mxu0 0.0
        %409 = vmatpush1.msra.mxu0 0.0
        %410 = vmatprep.subr.mxu0 0.0
        %411 = vmatpush1.msra.mxu0 0.0
        %412 = vmatprep.subr.mxu0 0.0
        %413 = vmatpush1.msra.mxu0 0.0
        %414 = vmatprep.subr.mxu0 0.0
        %415 = vmatpush1.msra.mxu0 0.0
        %416 = vmatprep.subr.mxu0 0.0
        %417 = vmatpush1.msra.mxu0 0.0
        %418 = vmatprep.subr.mxu0 0.0
        %419 = vmatpush1.msra.mxu0 0.0
        %420 = vmatprep.subr.mxu0 0.0
        %421 = vmatpush1.msra.mxu0 0.0
        %422 = vmatprep.subr.mxu0 0.0
        %423 = vmatpush1.msra.mxu0 0.0
        %424 = vmatprep.subr.mxu0 0.0
        %425 = vmatpush1.msra.mxu0 0.0
        %426 = vmatprep.subr.mxu0 0.0
        %427 = vmatpush1.msra.mxu0 0.0
        %428 = vmatprep.subr.mxu0 0.0
        %429 = vmatpush1.msra.mxu0 0.0
        %430 = vmatprep.subr.mxu0 0.0
        %431 = vmatpush1.msra.mxu0 0.0
        %432 = vmatprep.subr.mxu0 0.0
        %433 = vmatpush1.msra.mxu0 0.0
        %434 = vmatprep.subr.mxu0 0.0
        %435 = vmatpush1.msra.mxu0 0.0
        %436 = vmatprep.subr.mxu0 0.0
        %437 = vmatpush1.msra.mxu0 0.0
        %438 = vmatprep.subr.mxu0 0.0
        %439 = vmatpush1.msra.mxu0 0.0
        %440 = vmatprep.subr.mxu0 0.0
        %441 = vmatpush1.msra.mxu0 0.0
        %442 = vmatprep.subr.mxu0 0.0
        %443 = vmatpush1.msra.mxu0 0.0
        %444 = vmatprep.mubr.f32.mxu0 0.0
        %445 = vmatmul.mubr.f32.gmra.mrb[0].mxu0 %v369
        %v446 = vpop.f32.mrb[0].mxu0
        %v447 = vadd.f32 %v351, %v446
        %v448 = vpop.f32.mrb[0].mxu0
        %449 = vmatprep.mubr.f32.mxu0 0.0
        %450 = vmatmul.mubr.f32.gmra.mrb[0].mxu0 %v372
        %v451 = vpop.f32.mrb[0].mxu0
        %v452 = vadd.f32 %v356, %v451
        %v453 = vpop.f32.mrb[0].mxu0
        %454 = vmatprep.mubr.f32.mxu0 0.0
        %455 = vmatmul.mubr.f32.gmra.mrb[0].mxu0 %v375
        %v456 = vpop.f32.mrb[0].mxu0
        %v457 = vadd.f32 %v361, %v456
        %v458 = vpop.f32.mrb[0].mxu0
        %459 = vmatprep.mubr.f32.mxu0 0.0
        %460 = vmatmul.mubr.f32.gmra.mrb[0].mxu0 %v378
        %v461 = vpop.f32.mrb[0].mxu0
        %v462 = vadd.f32 %v366, %v461
        %v463 = vpop.f32.mrb[0].mxu0
        %464 = vdwg.mxu0
        %v465 = vtanh.pop %v447
        %v466 = vtanh.pop %v452
        %v467 = vtanh.pop %v457
        %v468 = vtanh.pop %v462
        %470 = vset.pattern.permute.xlu0 0
        %471 = vperm.xlu0 %470, %v211
        %v472 = vpop.permute.xlu0 %471
        %475 = vset.pattern.permute.xlu0 0
        %476 = vperm.xlu0 %475, %v212
        %v477 = vpop.permute.xlu0 %476
        %480 = vset.pattern.permute.xlu0 0
        %481 = vperm.xlu0 %480, %v213
        %v482 = vpop.permute.xlu0 %481
        %485 = vset.pattern.permute.xlu0 0
        %486 = vperm.xlu0 %485, %v214
        %v487 = vpop.permute.xlu0 %486
        %v490 = vsel %vm246, %v197, 0
        %v493 = vsel %vm246, %v198, 0
        %v496 = vsel %vm246, %v199, 0
        %v499 = vsel %vm246, %v200, 0
        %501 = vmatprep.subr.mxu0 0.0
        %502 = vmatpush1.msra.mxu0 %v465
        %503 = vmatprep.subr.mxu0 0.0
        %504 = vmatpush1.msra.mxu0 %v466
        %505 = vmatprep.subr.mxu0 0.0
        %506 = vmatpush1.msra.mxu0 %v467
        %507 = vmatprep.subr.mxu0 0.0
        %508 = vmatpush1.msra.mxu0 %v468
        %509 = vmatprep.subr.mxu0 0.0
        %510 = vmatpush1.msra.mxu0 0.0
        %511 = vmatprep.subr.mxu0 0.0
        %512 = vmatpush1.msra.mxu0 0.0
        %513 = vmatprep.subr.mxu0 0.0
        %514 = vmatpush1.msra.mxu0 0.0
        %515 = vmatprep.subr.mxu0 0.0
        %516 = vmatpush1.msra.mxu0 0.0
        %517 = vmatprep.subr.mxu0 0.0
        %518 = vmatpush1.msra.mxu0 0.0
        %519 = vmatprep.subr.mxu0 0.0
        %520 = vmatpush1.msra.mxu0 0.0
        %521 = vmatprep.subr.mxu0 0.0
        %522 = vmatpush1.msra.mxu0 0.0
        %523 = vmatprep.subr.mxu0 0.0
        %524 = vmatpush1.msra.mxu0 0.0
        %525 = vmatprep.subr.mxu0 0.0
        %526 = vmatpush1.msra.mxu0 0.0
        %527 = vmatprep.subr.mxu0 0.0
        %528 = vmatpush1.msra.mxu0 0.0
        %529 = vmatprep.subr.mxu0 0.0
        %530 = vmatpush1.msra.mxu0 0.0
        %531 = vmatprep.subr.mxu0 0.0
        %532 = vmatpush1.msra.mxu0 0.0
        %533 = vmatprep.subr.mxu0 0.0
        %534 = vmatpush1.msra.mxu0 0.0
        %535 = vmatprep.subr.mxu0 0.0
        %536 = vmatpush1.msra.mxu0 0.0
        %537 = vmatprep.subr.mxu0 0.0
        %538 = vmatpush1.msra.mxu0 0.0
        %539 = vmatprep.subr.mxu0 0.0
        %540 = vmatpush1.msra.mxu0 0.0
        %541 = vmatprep.subr.mxu0 0.0
        %542 = vmatpush1.msra.mxu0 0.0
        %543 = vmatprep.subr.mxu0 0.0
        %544 = vmatpush1.msra.mxu0 0.0
        %545 = vmatprep.subr.mxu0 0.0
        %546 = vmatpush1.msra.mxu0 0.0
        %547 = vmatprep.subr.mxu0 0.0
        %548 = vmatpush1.msra.mxu0 0.0
        %549 = vmatprep.subr.mxu0 0.0
        %550 = vmatpush1.msra.mxu0 0.0
        %551 = vmatprep.subr.mxu0 0.0
        %552 = vmatpush1.msra.mxu0 0.0
        %553 = vmatprep.subr.mxu0 0.0
        %554 = vmatpush1.msra.mxu0 0.0
        %555 = vmatprep.subr.mxu0 0.0
        %556 = vmatpush1.msra.mxu0 0.0
        %557 = vmatprep.subr.mxu0 0.0
        %558 = vmatpush1.msra.mxu0 0.0
        %559 = vmatprep.subr.mxu0 0.0
        %560 = vmatpush1.msra.mxu0 0.0
        %561 = vmatprep.subr.mxu0 0.0
        %562 = vmatpush1.msra.mxu0 0.0
        %563 = vmatprep.subr.mxu0 0.0
        %564 = vmatpush1.msra.mxu0 0.0
        %565 = vmatprep.mubr.f32.mxu0 0.0
        %566 = vmatmul.mubr.f32.gmra.mrb[0].mxu0 %v490
        %v567 = vpop.f32.mrb[0].mxu0
        %v568 = vadd.f32 %v472, %v567
        %v569 = vpop.f32.mrb[0].mxu0
        %570 = vmatprep.mubr.f32.mxu0 0.0
        %571 = vmatmul.mubr.f32.gmra.mrb[0].mxu0 %v493
        %v572 = vpop.f32.mrb[0].mxu0
        %v573 = vadd.f32 %v477, %v572
        %v574 = vpop.f32.mrb[0].mxu0
        %575 = vmatprep.mubr.f32.mxu0 0.0
        %576 = vmatmul.mubr.f32.gmra.mrb[0].mxu0 %v496
        %v577 = vpop.f32.mrb[0].mxu0
        %v578 = vadd.f32 %v482, %v577
        %v579 = vpop.f32.mrb[0].mxu0
        %580 = vmatprep.mubr.f32.mxu0 0.0
        %581 = vmatmul.mubr.f32.gmra.mrb[0].mxu0 %v499
        %v582 = vpop.f32.mrb[0].mxu0
        %v583 = vadd.f32 %v487, %v582
        %v584 = vpop.f32.mrb[0].mxu0
        %585 = vdwg.mxu0
        %v586 = vtanh.pop %v568
        %v587 = vtanh.pop %v573
        %v588 = vtanh.pop %v578
        %v589 = vtanh.pop %v583
        %591 = vset.pattern.permute.xlu0 0
        %592 = vperm.xlu0 %591, %v216
        %v593 = vpop.permute.xlu0 %592
        %596 = vset.pattern.permute.xlu0 0
        %597 = vperm.xlu0 %596, %v217
        %v598 = vpop.permute.xlu0 %597
        %601 = vset.pattern.permute.xlu0 0
        %602 = vperm.xlu0 %601, %v218
        %v603 = vpop.permute.xlu0 %602
        %606 = vset.pattern.permute.xlu0 0
        %607 = vperm.xlu0 %606, %v219
        %v608 = vpop.permute.xlu0 %607
        %v610 = vmul.f32 %v593, %v586
        %v611 = vmul.f32 %v598, %v587
        %v612 = vmul.f32 %v603, %v588
        %v613 = vmul.f32 %v608, %v589
        %v614 = vadd.f32 %v610, %v611
        %v615 = vadd.f32 %v614, %v612
        %v616 = vadd.f32 %v615, %v613
        %v617 = vrot.slane %v616, 4
        %v618 = vadd.f32 %v616, %v617
        %v619 = vrot.slane %v618, 2
        %v620 = vadd.f32 %v618, %v619
        %v621 = vrot.slane %v620, 1
        %v622 = vadd.f32 %v620, %v621
        %624 = vset.pattern.permute.xlu0 0
        %625 = vperm.xlu0 %624, %v221
        %v626 = vpop.permute.xlu0 %625
        %v628 = vadd.f32 %v622, %v626
        %629 = vst [vmem:[%s186] sm:$0x1] %v628
        %s630 = sand.u32 %s96, 1
        %s631 = scalar_lea.sflag [#allocation4], %s630
        %s632 = sand.u32 %s96, 1
        %s633 = scalar_lea.vmem [#allocation5], %s632
        // Predicated region
        $region37: #{tpu_custom_call.1} parent=31 // pred_check
          %p634 = pneg %p106
        $region38: #{tpu_custom_call.1} parent=31 // pred_check_branch
          %636 = sbr.rel (%p634) target = $region40
        $region39: #{tpu_custom_call.1} parent=31 // pred_region
          %s638 = ssub.s32 16, 16
          %639 = vsyncadd %s631, %s638
          %s640 = smul.addr %s20, 16
          %s641 = scalar_lea.hbm %s3, %s640
          %s643 = sshll.u32 %s633, 4
          %s644 = int_to_ptr.vmem [resolvable:$true] %s643
          %646 = dma.vmem_to_hbm [thread:$0]  %s644, 16, %s641, %s631
        $region40: #{tpu_custom_call.1} parent=31 // pred_fallthru
          _
      $region32: #{tpu_custom_call.1} parent=5 // pred_fallthru
        _
      %p647 = scmp.le.s32.totalorder 2, %s15
      // Predicated region
      $region41: #{tpu_custom_call.1} parent=5 // pred_check
        %p648 = pneg %p647
      $region42: #{tpu_custom_call.1} parent=5 // pred_check_branch
        %650 = sbr.rel (%p648) target = $region44
      $region43: #{tpu_custom_call.1} parent=5 // pred_region
        %s651 = ssub.s32 %s15, 2
        // Predicated region
        $region45: #{tpu_custom_call.1} parent=43 // pred_check
          %p652 = pneg %p112
        $region46: #{tpu_custom_call.1} parent=43 // pred_check_branch
          %654 = sbr.rel (%p652) target = $region48
        $region47: #{tpu_custom_call.1} parent=43 // pred_region
          %s655 = sand.u32 %s97, 1
          %s656 = scalar_lea.sflag [#allocation4], %s655
          %s657 = sand.u32 %s97, 1
          %s658 = scalar_lea.vmem [#allocation5], %s657
          %659 = dma.done %s656, 16
        $region48: #{tpu_custom_call.1} parent=43 // pred_fallthru
          _
      $region44: #{tpu_custom_call.1} parent=5 // pred_fallthru
        _
    $region6: #{tpu_custom_call.1} parent=1 // loop_footer
      %s19 = sadd.s32 1, %s15
    $region7: #{tpu_custom_call.1} parent=1 // loop_footer_branch
      %14 = sbr.rel target = $region3
    $region8: #{tpu_custom_call.1} parent=1 // loop_exit
      _
    %660 = vsyncpa [#allocation3], 1
    %s661 = scalar_lea.sflag [#allocation3], 1
    %662 = vsyncpa %s661, 1
    %663 = vsyncpa [#allocation4], 1
    %s664 = scalar_lea.sflag [#allocation4], 1
    %665 = vsyncpa %s664, 1

</llo_original>
